<compile_context>
chip_gen: v6e
topology: v6e:2x2x1
jax: 0.10.0
libtpu: 0.0.40
codegen_flags: <defaults>
</compile_context>

<pallas_src>
import math
from functools import partial

import jax
import jax.numpy as jnp
from jax.experimental import pallas as pl
from jax.experimental.pallas import tpu as pltpu


# ------------------------------ buffer (init-time) ------------------------------

def make_positional_encoding(d_model: int, max_len: int) -> jnp.ndarray:
    """Same table PyTorch builds in PositionalEncoding.__init__ (register_buffer)."""
    position = jnp.arange(max_len, dtype=jnp.float32)[:, None]
    div_term = jnp.exp(jnp.arange(0, d_model, 2, dtype=jnp.float32)
                       * (-math.log(10000.0) / d_model))
    pe = jnp.zeros((max_len, d_model), dtype=jnp.float32)
    pe = pe.at[:, 0::2].set(jnp.sin(position * div_term))
    pe = pe.at[:, 1::2].set(jnp.cos(position * div_term))
    return pe[None]                                     # (1, max_len, d_model)


# ------------------------------ Pallas kernel -----------------------------------

def _pe_add_kernel(x_ref, pe_ref, o_ref):
    # x_ref: (tile_b, tile_f), pe_ref: (1, tile_f) -> broadcast over the batch tile (VPU).
    o_ref[...] = x_ref[...] + pe_ref[...]


def _pick_tile(n: int, cap: int) -> int:
    # cap is already aligned (multiple of 8 for sublanes / 128 for lanes);
    # if n <= cap the block equals the full dim, which is always legal.
    return n if n <= cap else cap


@partial(jax.jit, static_argnames=("block_b", "block_f"))
def positional_encoding_forward(x, pe, *, block_b: int = 256, block_f: int = 2048):
    """out = x + pe[: x.shape[0]]  (identical broadcast requirement as the PyTorch module)."""
    pe_sl = pe[: x.shape[0]]                            # pe.shape[0] == 1, so this is all of pe
    B, T, D = x.shape
    if pe_sl.shape != (1, T, D):
        raise ValueError(
            f"x {x.shape} does not broadcast with pe {pe.shape} "
            "(same requirement as the PyTorch module)")

    out_dtype = jnp.result_type(x.dtype, pe.dtype)
    flat = T * D
    x2 = x.reshape(B, flat).astype(out_dtype)           # free reshape: lane axis is T*D wide
    pe2 = pe_sl.reshape(1, flat).astype(out_dtype)

    tile_b = _pick_tile(B, block_b)                     # block_b is a multiple of 8
    tile_f = _pick_tile(flat, block_f)                  # block_f is a multiple of 128
    grid = (pl.cdiv(B, tile_b), pl.cdiv(flat, tile_f))

    itemsize = jnp.dtype(out_dtype).itemsize
    # x tile + out tile double-buffered, pe row double-buffered, plus slack.
    vmem_bytes = (2 * 2 * tile_b * tile_f + 2 * tile_f) * itemsize + (2 << 20)
    vmem_bytes = int(min(max(vmem_bytes, 4 << 20), 48 << 20))   # stay inside v7x's 64 MiB

    out = pl.pallas_call(
        _pe_add_kernel,
        out_shape=jax.ShapeDtypeStruct((B, flat), out_dtype),
        grid=grid,
        in_specs=[pl.BlockSpec((tile_b, tile_f), lambda i, j: (i, j)),
                  pl.BlockSpec((1, tile_f), lambda i, j: (0, j))],
        out_specs=pl.BlockSpec((tile_b, tile_f), lambda i, j: (i, j)),
        compiler_params=pltpu.CompilerParams(
            dimension_semantics=("parallel", "parallel"),
            vmem_limit_bytes=vmem_bytes),
    )(x2, pe2)
    return out.reshape(B, T, D)


# ------------------------------------ test --------------------------------------

if __name__ == "__main__":
    key = jax.random.PRNGKey(0)
    batch, max_len, d_model = 8, 16, 64

    pe = make_positional_encoding(d_model, max_len)                  # buffer (1, 16, 64)
    x = jax.random.normal(key, (batch, max_len, d_model), jnp.float32)

    out = positional_encoding_forward(x, pe)
    jax.block_until_ready(out)

    ref = x + pe[: x.shape[0]]                                       # plain-JAX reference
    assert out.shape == (batch, max_len, d_model), out.shape
    assert bool(jnp.all(jnp.isfinite(out)))
    assert bool(jnp.allclose(out, ref, atol=1e-6, rtol=1e-6))
    print("KERNEL_OK")
</pallas_src>

<mosaic_0001>
module attributes {stable_mosaic.version = 11 : i64} {
  func.func @_pe_add_kernel(%arg0: i32, %arg1: i32, %arg2: memref<8x1024xf32, #tpu.memory_space<vmem>>, %arg3: memref<1x1024xf32, #tpu.memory_space<vmem>>, %arg4: memref<8x1024xf32, #tpu.memory_space<vmem>>) attributes {dimension_semantics = [#tpu.dimension_semantics<parallel>, #tpu.dimension_semantics<parallel>], iteration_bounds = array<i64: 1, 1>, scalar_prefetch = 0 : i64, scratch_operands = 0 : i64, tpu.core_type = #tpu.core_type<tc>, window_params = [{transform_indices = @transform_0, window_bounds = array<i64: 8, 1024>}, {transform_indices = @transform_1, window_bounds = array<i64: 1, 1024>}, {transform_indices = @transform_2, window_bounds = array<i64: 8, 1024>}]} {
    %c0 = arith.constant 0 : index
    %c0_0 = arith.constant 0 : index
    %0 = vector.load %arg2[%c0, %c0_0] : memref<8x1024xf32, #tpu.memory_space<vmem>>, vector<8x1024xf32>
    %c0_1 = arith.constant 0 : index
    %c0_2 = arith.constant 0 : index
    %1 = vector.load %arg3[%c0_1, %c0_2] : memref<1x1024xf32, #tpu.memory_space<vmem>>, vector<1x1024xf32>
    %2 = vector.broadcast %1 : vector<1x1024xf32> to vector<8x1024xf32>
    %3 = arith.addf %0, %2 : vector<8x1024xf32>
    %c0_3 = arith.constant 0 : index
    %c0_4 = arith.constant 0 : index
    %4 = vector.load %arg4[%c0_3, %c0_4] : memref<8x1024xf32, #tpu.memory_space<vmem>>, vector<8x1024xf32>
    tpu.vector_store %arg4[%c0_3, %c0_4], %3 {strides = array<i32>} : memref<8x1024xf32, #tpu.memory_space<vmem>>, vector<8x1024xf32>,
    return
  }
  func.func @transform_0(%arg0: i32, %arg1: i32) -> (i32, i32) {
    %c0_i32 = arith.constant 0 : i32
    return %arg0, %arg1 : i32, i32
  }
  func.func @transform_1(%arg0: i32, %arg1: i32) -> (i32, i32) {
    %c0_i32 = arith.constant 0 : i32
    %c0_i32_0 = arith.constant 0 : i32
    return %c0_i32, %arg1 : i32, i32
  }
  func.func @transform_2(%arg0: i32, %arg1: i32) -> (i32, i32) {
    %c0_i32 = arith.constant 0 : i32
    return %arg0, %arg1 : i32, i32
  }
}

</mosaic_0001>

<llo_original>
// kernel: positional_encoding_forward.1
$region0: #{positional_encoding_forward.1}
  #allocation0 [shape = 'u32[]', space=smem, size = 0x4, offset = 0x4, fixed_abs, tag = 'smem constant byte address 0x4 - core index']
  #allocation1 [shape = 'u32[144,128]{1,0:T(1,128)}', space=vmem, size = 0x12000, scoped, tag = 'internal scratch']
  %s0 = inlined_call_operand.vmem [shape: f32[8,1024], index: 0, kind: input, shape index: {}]
  %s1 = inlined_call_operand.vmem [shape: f32[1,1024], index: 1, kind: input, shape index: {}]
  %s2 = inlined_call_operand.vmem [shape: f32[8,1024], index: 2, kind: output, shape index: {}]
  %s3 = sld [smem:[#allocation0]]
  $region18: #{positional_encoding_forward.1} parent=0
    _
  %s5 = ssub.s32 1, %s3
  %s6 = scalar_select 0, %s5, %s3
  // Predicated region
  $region2: #{positional_encoding_forward.1} parent=0 // pred_check
    _
  $region3: #{positional_encoding_forward.1} parent=0 // pred_check_branch
    %8 = sbr.rel (0) target = $region5
  $region4: #{positional_encoding_forward.1} parent=0 // pred_region
    _
  $region5: #{positional_encoding_forward.1} parent=0 // pred_fallthru
    _
  // Predicated region
  $region6: #{positional_encoding_forward.1} parent=0 // pred_check
    _
  $region7: #{positional_encoding_forward.1} parent=0 // pred_check_branch
    %10 = sbr.rel (0) target = $region9
  $region8: #{positional_encoding_forward.1} parent=0 // pred_region
    _
  $region9: #{positional_encoding_forward.1} parent=0 // pred_fallthru
    _
  %v11 = vld [vmem:[%s0] sm:$0xff]
  %v12 = vld [vmem:[%s0 + $0x8] sm:$0xff]
  %v13 = vld [vmem:[%s0 + $0x10] sm:$0xff]
  %v14 = vld [vmem:[%s0 + $0x18] sm:$0xff]
  %v15 = vld [vmem:[%s0 + $0x20] sm:$0xff]
  %v16 = vld [vmem:[%s0 + $0x28] sm:$0xff]
  %v17 = vld [vmem:[%s0 + $0x30] sm:$0xff]
  %v18 = vld [vmem:[%s0 + $0x38] sm:$0xff]
  %v19 = vld [vmem:[%s1] sm:$0xff]
  %v21 = vlaneseq
  %v22 = vshrl.u32 %v21, 7
  %v23 = vsub.s32 0, %v22
  %v24 = vrot.slane %v19, %v23
  %v25 = vlaneseq
  %v26 = vshrl.u32 %v25, 7
  %v27 = vsub.s32 1, %v26
  %v28 = vrot.slane %v19, %v27
  %v29 = vlaneseq
  %v30 = vshrl.u32 %v29, 7
  %v31 = vsub.s32 2, %v30
  %v32 = vrot.slane %v19, %v31
  %v33 = vlaneseq
  %v34 = vshrl.u32 %v33, 7
  %v35 = vsub.s32 3, %v34
  %v36 = vrot.slane %v19, %v35
  %v37 = vlaneseq
  %v38 = vshrl.u32 %v37, 7
  %v39 = vsub.s32 4, %v38
  %v40 = vrot.slane %v19, %v39
  %v41 = vlaneseq
  %v42 = vshrl.u32 %v41, 7
  %v43 = vsub.s32 5, %v42
  %v44 = vrot.slane %v19, %v43
  %v45 = vlaneseq
  %v46 = vshrl.u32 %v45, 7
  %v47 = vsub.s32 6, %v46
  %v48 = vrot.slane %v19, %v47
  %v49 = vlaneseq
  %v50 = vshrl.u32 %v49, 7
  %v51 = vsub.s32 7, %v50
  %v52 = vrot.slane %v19, %v51
  %v61 = vadd.f32 %v11, %v24
  %v62 = vadd.f32 %v12, %v28
  %v63 = vadd.f32 %v13, %v32
  %v64 = vadd.f32 %v14, %v36
  %v65 = vadd.f32 %v15, %v40
  %v66 = vadd.f32 %v16, %v44
  %v67 = vadd.f32 %v17, %v48
  %v68 = vadd.f32 %v18, %v52
  %69 = vst [vmem:[%s2] sm:$0xff] %v61
  %70 = vst [vmem:[%s2 + $0x8] sm:$0xff] %v62
  %71 = vst [vmem:[%s2 + $0x10] sm:$0xff] %v63
  %72 = vst [vmem:[%s2 + $0x18] sm:$0xff] %v64
  %73 = vst [vmem:[%s2 + $0x20] sm:$0xff] %v65
  %74 = vst [vmem:[%s2 + $0x28] sm:$0xff] %v66
  %75 = vst [vmem:[%s2 + $0x30] sm:$0xff] %v67
  %76 = vst [vmem:[%s2 + $0x38] sm:$0xff] %v68
  // Predicated region
  $region10: #{positional_encoding_forward.1} parent=0 // pred_check
    _
  $region11: #{positional_encoding_forward.1} parent=0 // pred_check_branch
    %78 = sbr.rel (0) target = $region13
  $region12: #{positional_encoding_forward.1} parent=0 // pred_region
    _
  $region13: #{positional_encoding_forward.1} parent=0 // pred_fallthru
    _
  // Predicated region
  $region14: #{positional_encoding_forward.1} parent=0 // pred_check
    _
  $region15: #{positional_encoding_forward.1} parent=0 // pred_check_branch
    %80 = sbr.rel (0) target = $region17
  $region16: #{positional_encoding_forward.1} parent=0 // pred_region
    _
  $region17: #{positional_encoding_forward.1} parent=0 // pred_fallthru
    _

</llo_original>
